<compile_context>
chip_gen: v7x
topology: tpu7x:2x2x1
jax: 0.10.0
libtpu: 0.0.40
codegen_flags: <defaults>
</compile_context>

<pallas_src>
import jax
import jax.numpy as jnp
from jax.experimental import pallas as pl
from jax.experimental.pallas import tpu as pltpu

EMB_DIM = 16
HIDDEN_DIM = 32
OUTPUT_DIM = 2
VOCAB_SIZE = 50       # synthetic vocab (module builds it from a csv; not needed here)
SEQ_LEN = 8
BATCH = 2

GATE_WIDTH = 128                                  # one 128-lane block holds all 3 gates (3*H = 96)
BATCH_PAD = 8                                     # batch padded to a full f32 sublane tile
VOCAB_PAD = ((VOCAB_SIZE + 1 + 63) // 64) * 64    # one-hot contraction width (>= V+1)
MXU_DTYPE = jnp.bfloat16                          # matmul operand dtype (accumulation stays f32)


def _make_gru_fc_kernel(T, B, H, O):
    """Build the fused one-hot-gather + GRU + Linear + sigmoid kernel (static T, B)."""
    BP, GW, VP = BATCH_PAD, GATE_WIDTH, VOCAB_PAD
    TBP = T * BP

    def kernel(ids_ref, proj_ref, w_hh_ref, b_gi_ref, b_hn_ref,
               w_fc_ref, b_fc_ref, out_ref):
        # ids_ref  : (T*BP, 1) int32  time-major token ids, batch padded with 0 (pad token)
        # proj_ref : (VP, GW)  bf16   pre-projected embedding table (emb @ W_ih^T, gate-packed)
        # w_hh_ref : (H, GW)   bf16   gate-packed hidden weights (r|z|n at lanes 0/H/2H)
        # b_gi_ref : (1, GW)   f32    folded biases (r: bi+bh, z: bi+bh, n: bi), pad lanes 0
        # b_hn_ref : (1, H)    f32    hidden bias of the n gate
        # w_fc_ref : (H, O)    bf16
        # b_fc_ref : (1, O)    f32
        # out_ref  : (B, O)    f32    sigmoid(fc(h_T))

        # ---- 1. fused embedding gather + input projection (one compare + one MXU push) ----
        ids = ids_ref[...]                                              # (TBP, 1)
        onehot = (jax.lax.broadcasted_iota(jnp.int32, (TBP, VP), 1)
                  == ids).astype(MXU_DTYPE)                             # 0/1 exact in bf16
        gi_all = jnp.dot(onehot, proj_ref[...],
                         preferred_element_type=jnp.float32) + b_gi_ref[...]
        # gi_all: (T*BP, GW) f32, biases folded; 8 sublane-aligned rows per timestep.

        w_hh = w_hh_ref[...]                                            # (H, GW) bf16
        b_hn = jnp.broadcast_to(b_hn_ref[...], (BP, H))                 # hoisted broadcast
        # TODO(synk): folding b_hn into w_hh via an augmented constant-1 column of h needs
        # a per-step lane-concat to rebuild that column -- costs more than the 32-lane VPU
        # add it removes (the chain is MXU/EUP latency; VPU has slack).

        # ---- 2. GRU recurrence; one 128-lane MXU pass per step, fully unrolled ----
        # TODO(synk): if T grows beyond ~32, move T onto a fori_loop/grid axis to bound
        # code size; optionally hold w_hh resident in the MXU via pltpu.matmul_push_rhs
        # (verify weight reload is on the critical path in a bundle dump first).
        h = jnp.zeros((BP, H), jnp.float32)
        for t in range(T):
            gi = gi_all[t * BP:(t + 1) * BP, :]                         # static sublane-aligned slice
            gh = jnp.dot(h.astype(MXU_DTYPE), w_hh,
                         preferred_element_type=jnp.float32)            # (BP, GW), 1 MXU pass
            r = jax.nn.sigmoid(gi[:, 0:H] + gh[:, 0:H])
            z = jax.nn.sigmoid(gi[:, H:2 * H] + gh[:, H:2 * H])
            n = jnp.tanh(gi[:, 2 * H:3 * H] + r * (gh[:, 2 * H:3 * H] + b_hn))
            h = (1.0 - z) * n + z * h

        # ---- 3. final Linear + sigmoid on the last hidden state ----
        logits = jnp.dot(h.astype(MXU_DTYPE), w_fc_ref[...],
                         preferred_element_type=jnp.float32) + b_fc_ref[...]
        out_ref[...] = jax.nn.sigmoid(logits[0:B, :])

    return kernel


def init_params(key):
    """Deterministic synthetic parameters matching the module's shapes."""
    ks = jax.random.split(key, 8)
    s = 0.1
    emb = s * jax.random.normal(ks[0], (VOCAB_SIZE + 1, EMB_DIM), jnp.float32)
    emb = emb.at[0].set(0.0)  # padding_idx=0
    return {
        "embedding": emb,
        # PyTorch GRU param shapes: weight_ih_l0 (3H, E), weight_hh_l0 (3H, H)
        "w_ih": s * jax.random.normal(ks[1], (3 * HIDDEN_DIM, EMB_DIM), jnp.float32),
        "w_hh": s * jax.random.normal(ks[2], (3 * HIDDEN_DIM, HIDDEN_DIM), jnp.float32),
        "b_ih": s * jax.random.normal(ks[3], (3 * HIDDEN_DIM,), jnp.float32),
        "b_hh": s * jax.random.normal(ks[4], (3 * HIDDEN_DIM,), jnp.float32),
        # nn.Linear(hidden_dim, output_dim): weight (O, H), bias (O,)
        "w_fc": s * jax.random.normal(ks[5], (OUTPUT_DIM, HIDDEN_DIM), jnp.float32),
        "b_fc": s * jax.random.normal(ks[6], (OUTPUT_DIM,), jnp.float32),
    }


def prepare_kernel_params(params):
    """One-time repack of PyTorch-layout params into kernel-friendly layout."""
    H, E, GW = HIDDEN_DIM, EMB_DIM, GATE_WIDTH

    def pack_gates_t(w, in_dim):
        # w: (3H, in_dim), gates [r, z, n] -> (in_dim, GW); gate g at lanes
        # [g*H, (g+1)*H); pad lanes 3H..GW-1 stay zero (inert downstream).
        out = jnp.zeros((in_dim, GW), jnp.float32)
        for g in range(3):
            out = out.at[:, g * H:(g + 1) * H].set(w[g * H:(g + 1) * H, :].T)
        return out

    w_ih_packed = pack_gates_t(params["w_ih"], E)            # (E, GW) f32
    w_hh_packed = pack_gates_t(params["w_hh"], H)            # (H, GW) f32

    # Fold W_ih into the embedding table (gather and input projection commute).
    proj = params["embedding"].astype(jnp.float32) @ w_ih_packed      # (V+1, GW) f32
    proj_table = jnp.zeros((VOCAB_PAD, GW), jnp.float32)
    proj_table = proj_table.at[:VOCAB_SIZE + 1, :].set(proj)          # pad rows zero

    b_ih, b_hh = params["b_ih"], params["b_hh"]
    b_gi = jnp.zeros((1, GW), jnp.float32)
    b_gi = b_gi.at[0, 0:H].set(b_ih[0:H] + b_hh[0:H])                 # r
    b_gi = b_gi.at[0, H:2 * H].set(b_ih[H:2 * H] + b_hh[H:2 * H])     # z
    b_gi = b_gi.at[0, 2 * H:3 * H].set(b_ih[2 * H:3 * H])             # n (input bias only)

    return {
        "proj_table": proj_table.astype(MXU_DTYPE),
        "w_hh_packed": w_hh_packed.astype(MXU_DTYPE),
        "b_gi": b_gi,
        "b_hn": b_hh[2 * H:3 * H][None, :].astype(jnp.float32),
        "w_fc_t": params["w_fc"].T.astype(MXU_DTYPE),
        "b_fc": params["b_fc"][None, :].astype(jnp.float32),
    }


def standard_nlp_forward(x_tokens, kparams):
    """x_tokens: (B, T) int32 token ids. Returns (B, OUTPUT_DIM) f32."""
    B, T = x_tokens.shape
    assert B <= BATCH_PAD, "move batch onto a grid axis once B > 8"

    # Time-major ids, batch padded to a full sublane tile with token 0 (pad row -> zero).
    ids = jnp.zeros((T, BATCH_PAD), jnp.int32).at[:, :B].set(
        jnp.transpose(x_tokens, (1, 0)).astype(jnp.int32))
    ids = ids.reshape(T * BATCH_PAD, 1)

    kernel = _make_gru_fc_kernel(T, B, HIDDEN_DIM, OUTPUT_DIM)
    vmem = pl.BlockSpec(memory_space=pltpu.MemorySpace.VMEM)

    # Grid-less: total residency < 100 KB, far under VMEM on v5e/v6e/v7x.
    # TODO(synk): add a leading "parallel" batch grid axis (weights index-mapped to a
    # constant block) once BATCH scales, to engage v7x's second TensorCore.
    return pl.pallas_call(
        kernel,
        out_shape=jax.ShapeDtypeStruct((B, OUTPUT_DIM), jnp.float32),
        in_specs=[vmem] * 7,
        out_specs=vmem,
    )(
        ids,
        kparams["proj_table"],
        kparams["w_hh_packed"],
        kparams["b_gi"],
        kparams["b_hn"],
        kparams["w_fc_t"],
        kparams["b_fc"],
    )


def _reference_forward(x_tokens, params):
    """Pure-JAX f32 reference of the PyTorch forward (for a sanity check)."""
    H = HIDDEN_DIM
    emb = jnp.take(params["embedding"], x_tokens, axis=0)             # (B, T, E)
    B, T, _ = emb.shape
    h = jnp.zeros((B, H), jnp.float32)
    for t in range(T):
        x_t = emb[:, t, :]
        gi = x_t @ params["w_ih"].T + params["b_ih"]
        gh = h @ params["w_hh"].T + params["b_hh"]
        r = jax.nn.sigmoid(gi[:, :H] + gh[:, :H])
        z = jax.nn.sigmoid(gi[:, H:2 * H] + gh[:, H:2 * H])
        n = jnp.tanh(gi[:, 2 * H:] + r * gh[:, 2 * H:])
        h = (1.0 - z) * n + z * h
    return jax.nn.sigmoid(h @ params["w_fc"].T + params["b_fc"])


if __name__ == "__main__":
    key = jax.random.PRNGKey(0)
    k_par, k_tok = jax.random.split(key)
    params = init_params(k_par)
    kparams = prepare_kernel_params(params)

    # token ids in [0, vocab_size], 0 = padding index
    x_tokens = jax.random.randint(k_tok, (BATCH, SEQ_LEN), 0, VOCAB_SIZE + 1,
                                  dtype=jnp.int32)

    out = standard_nlp_forward(x_tokens, kparams)
    out = jax.block_until_ready(out)

    ref = _reference_forward(x_tokens, params)
    assert out.shape == (BATCH, OUTPUT_DIM)
    # bf16 MXU operands (f32 accumulation) -> tolerance loosened vs f32 ref.
    assert jnp.allclose(out, ref, atol=5e-3, rtol=5e-3), (out, ref)

    print("KERNEL_OK")
</pallas_src>

<mosaic_0001>
module attributes {stable_mosaic.version = 11 : i64} {
  func.func @kernel(%arg0: memref<64x1xi32, #tpu.memory_space<vmem>>, %arg1: memref<64x128xbf16, #tpu.memory_space<vmem>>, %arg2: memref<32x128xbf16, #tpu.memory_space<vmem>>, %arg3: memref<1x128xf32, #tpu.memory_space<vmem>>, %arg4: memref<1x32xf32, #tpu.memory_space<vmem>>, %arg5: memref<32x2xbf16, #tpu.memory_space<vmem>>, %arg6: memref<1x2xf32, #tpu.memory_space<vmem>>, %arg7: memref<2x2xf32, #tpu.memory_space<vmem>>) attributes {dimension_semantics = [], scalar_prefetch = 0 : i64, scratch_operands = 0 : i64, tpu.core_type = #tpu.core_type<tc>} {
    %c0 = arith.constant 0 : index
    %c0_0 = arith.constant 0 : index
    %0 = vector.load %arg0[%c0, %c0_0] : memref<64x1xi32, #tpu.memory_space<vmem>>, vector<64x1xi32>
    %1 = tpu.iota {dimensions = array<i32: 1>} : vector<64x64xi32>
    %2 = vector.broadcast %0 : vector<64x1xi32> to vector<64x64xi32>
    %3 = arith.cmpi eq, %1, %2 : vector<64x64xi32>
    %4 = arith.extui %3 : vector<64x64xi1> to vector<64x64xi32>
    %5 = arith.sitofp %4 : vector<64x64xi32> to vector<64x64xf32>
    %6 = arith.truncf %5 : vector<64x64xf32> to vector<64x64xbf16>
    %c0_1 = arith.constant 0 : index
    %c0_2 = arith.constant 0 : index
    %7 = vector.load %arg1[%c0_1, %c0_2] : memref<64x128xbf16, #tpu.memory_space<vmem>>, vector<64x128xbf16>
    %cst = arith.constant dense<0.000000e+00> : vector<64x128xf32>
    %8 = tpu.matmul %6, %7, %cst {dimension_numbers = #tpu.dot_dimension_numbers<[1], [0], [0], [1], [0, 0, 1, 1], [], []>} : vector<64x64xbf16>, vector<64x128xbf16>, vector<64x128xf32> -> vector<64x128xf32>
    %c0_3 = arith.constant 0 : index
    %c0_4 = arith.constant 0 : index
    %9 = vector.load %arg3[%c0_3, %c0_4] : memref<1x128xf32, #tpu.memory_space<vmem>>, vector<1x128xf32>
    %10 = vector.broadcast %9 : vector<1x128xf32> to vector<64x128xf32>
    %11 = arith.addf %8, %10 : vector<64x128xf32>
    %c0_5 = arith.constant 0 : index
    %c0_6 = arith.constant 0 : index
    %12 = vector.load %arg2[%c0_5, %c0_6] : memref<32x128xbf16, #tpu.memory_space<vmem>>, vector<32x128xbf16>
    %c0_7 = arith.constant 0 : index
    %c0_8 = arith.constant 0 : index
    %13 = vector.load %arg4[%c0_7, %c0_8] : memref<1x32xf32, #tpu.memory_space<vmem>>, vector<1x32xf32>
    %14 = vector.shape_cast %13 : vector<1x32xf32> to vector<1x32xf32>
    %15 = vector.broadcast %14 : vector<1x32xf32> to vector<8x32xf32>
    %cst_9 = arith.constant 0.000000e+00 : f32
    %16 = vector.broadcast %cst_9 : f32 to vector<8x32xf32>
    %17 = vector.extract_strided_slice %11 {offsets = [0, 0], sizes = [8, 128], strides = [1, 1]} : vector<64x128xf32> to vector<8x128xf32>
    %18 = arith.truncf %16 : vector<8x32xf32> to vector<8x32xbf16>
    %cst_10 = arith.constant dense<0.000000e+00> : vector<8x128xf32>
    %19 = tpu.matmul %18, %12, %cst_10 {dimension_numbers = #tpu.dot_dimension_numbers<[1], [0], [0], [1], [0, 0, 1, 1], [], []>} : vector<8x32xbf16>, vector<32x128xbf16>, vector<8x128xf32> -> vector<8x128xf32>
    %20 = vector.extract_strided_slice %17 {offsets = [0, 0], sizes = [8, 32], strides = [1, 1]} : vector<8x128xf32> to vector<8x32xf32>
    %21 = vector.extract_strided_slice %19 {offsets = [0, 0], sizes = [8, 32], strides = [1, 1]} : vector<8x128xf32> to vector<8x32xf32>
    %22 = arith.addf %20, %21 : vector<8x32xf32>
    %23 = arith.negf %22 : vector<8x32xf32>
    %24 = math.exp %23 : vector<8x32xf32>
    %cst_11 = arith.constant 1.000000e+00 : f32
    %25 = vector.broadcast %cst_11 : f32 to vector<8x32xf32>
    %26 = arith.addf %25, %24 : vector<8x32xf32>
    %27 = arith.divf %25, %26 : vector<8x32xf32>
    %28 = vector.extract_strided_slice %17 {offsets = [0, 32], sizes = [8, 32], strides = [1, 1]} : vector<8x128xf32> to vector<8x32xf32>
    %29 = vector.extract_strided_slice %19 {offsets = [0, 32], sizes = [8, 32], strides = [1, 1]} : vector<8x128xf32> to vector<8x32xf32>
    %30 = arith.addf %28, %29 : vector<8x32xf32>
    %31 = arith.negf %30 : vector<8x32xf32>
    %32 = math.exp %31 : vector<8x32xf32>
    %cst_12 = arith.constant 1.000000e+00 : f32
    %33 = vector.broadcast %cst_12 : f32 to vector<8x32xf32>
    %34 = arith.addf %33, %32 : vector<8x32xf32>
    %35 = arith.divf %33, %34 : vector<8x32xf32>
    %36 = vector.extract_strided_slice %17 {offsets = [0, 64], sizes = [8, 32], strides = [1, 1]} : vector<8x128xf32> to vector<8x32xf32>
    %37 = vector.extract_strided_slice %19 {offsets = [0, 64], sizes = [8, 32], strides = [1, 1]} : vector<8x128xf32> to vector<8x32xf32>
    %38 = arith.addf %37, %15 : vector<8x32xf32>
    %39 = arith.mulf %27, %38 : vector<8x32xf32>
    %40 = arith.addf %36, %39 : vector<8x32xf32>
    %41 = math.tanh %40 : vector<8x32xf32>
    %cst_13 = arith.constant 1.000000e+00 : f32
    %42 = vector.broadcast %cst_13 : f32 to vector<8x32xf32>
    %43 = arith.subf %42, %35 : vector<8x32xf32>
    %44 = arith.mulf %43, %41 : vector<8x32xf32>
    %45 = arith.mulf %35, %16 : vector<8x32xf32>
    %46 = arith.addf %44, %45 : vector<8x32xf32>
    %47 = vector.extract_strided_slice %11 {offsets = [8, 0], sizes = [8, 128], strides = [1, 1]} : vector<64x128xf32> to vector<8x128xf32>
    %48 = arith.truncf %46 : vector<8x32xf32> to vector<8x32xbf16>
    %cst_14 = arith.constant dense<0.000000e+00> : vector<8x128xf32>
    %49 = tpu.matmul %48, %12, %cst_14 {dimension_numbers = #tpu.dot_dimension_numbers<[1], [0], [0], [1], [0, 0, 1, 1], [], []>} : vector<8x32xbf16>, vector<32x128xbf16>, vector<8x128xf32> -> vector<8x128xf32>
    %50 = vector.extract_strided_slice %47 {offsets = [0, 0], sizes = [8, 32], strides = [1, 1]} : vector<8x128xf32> to vector<8x32xf32>
    %51 = vector.extract_strided_slice %49 {offsets = [0, 0], sizes = [8, 32], strides = [1, 1]} : vector<8x128xf32> to vector<8x32xf32>
    %52 = arith.addf %50, %51 : vector<8x32xf32>
    %53 = arith.negf %52 : vector<8x32xf32>
    %54 = math.exp %53 : vector<8x32xf32>
    %cst_15 = arith.constant 1.000000e+00 : f32
    %55 = vector.broadcast %cst_15 : f32 to vector<8x32xf32>
    %56 = arith.addf %55, %54 : vector<8x32xf32>
    %57 = arith.divf %55, %56 : vector<8x32xf32>
    %58 = vector.extract_strided_slice %47 {offsets = [0, 32], sizes = [8, 32], strides = [1, 1]} : vector<8x128xf32> to vector<8x32xf32>
    %59 = vector.extract_strided_slice %49 {offsets = [0, 32], sizes = [8, 32], strides = [1, 1]} : vector<8x128xf32> to vector<8x32xf32>
    %60 = arith.addf %58, %59 : vector<8x32xf32>
    %61 = arith.negf %60 : vector<8x32xf32>
    %62 = math.exp %61 : vector<8x32xf32>
    %cst_16 = arith.constant 1.000000e+00 : f32
    %63 = vector.broadcast %cst_16 : f32 to vector<8x32xf32>
    %64 = arith.addf %63, %62 : vector<8x32xf32>
    %65 = arith.divf %63, %64 : vector<8x32xf32>
    %66 = vector.extract_strided_slice %47 {offsets = [0, 64], sizes = [8, 32], strides = [1, 1]} : vector<8x128xf32> to vector<8x32xf32>
    %67 = vector.extract_strided_slice %49 {offsets = [0, 64], sizes = [8, 32], strides = [1, 1]} : vector<8x128xf32> to vector<8x32xf32>
    %68 = arith.addf %67, %15 : vector<8x32xf32>
    %69 = arith.mulf %57, %68 : vector<8x32xf32>
    %70 = arith.addf %66, %69 : vector<8x32xf32>
    %71 = math.tanh %70 : vector<8x32xf32>
    %cst_17 = arith.constant 1.000000e+00 : f32
    %72 = vector.broadcast %cst_17 : f32 to vector<8x32xf32>
    %73 = arith.subf %72, %65 : vector<8x32xf32>
    %74 = arith.mulf %73, %71 : vector<8x32xf32>
    %75 = arith.mulf %65, %46 : vector<8x32xf32>
    %76 = arith.addf %74, %75 : vector<8x32xf32>
    %77 = vector.extract_strided_slice %11 {offsets = [16, 0], sizes = [8, 128], strides = [1, 1]} : vector<64x128xf32> to vector<8x128xf32>
    %78 = arith.truncf %76 : vector<8x32xf32> to vector<8x32xbf16>
    %cst_18 = arith.constant dense<0.000000e+00> : vector<8x128xf32>
    %79 = tpu.matmul %78, %12, %cst_18 {dimension_numbers = #tpu.dot_dimension_numbers<[1], [0], [0], [1], [0, 0, 1, 1], [], []>} : vector<8x32xbf16>, vector<32x128xbf16>, vector<8x128xf32> -> vector<8x128xf32>
    %80 = vector.extract_strided_slice %77 {offsets = [0, 0], sizes = [8, 32], strides = [1, 1]} : vector<8x128xf32> to vector<8x32xf32>
    %81 = vector.extract_strided_slice %79 {offsets = [0, 0], sizes = [8, 32], strides = [1, 1]} : vector<8x128xf32> to vector<8x32xf32>
    %82 = arith.addf %80, %81 : vector<8x32xf32>
    %83 = arith.negf %82 : vector<8x32xf32>
    %84 = math.exp %83 : vector<8x32xf32>
    %cst_19 = arith.constant 1.000000e+00 : f32
    %85 = vector.broadcast %cst_19 : f32 to vector<8x32xf32>
    %86 = arith.addf %85, %84 : vector<8x32xf32>
    %87 = arith.divf %85, %86 : vector<8x32xf32>
    %88 = vector.extract_strided_slice %77 {offsets = [0, 32], sizes = [8, 32], strides = [1, 1]} : vector<8x128xf32> to vector<8x32xf32>
    %89 = vector.extract_strided_slice %79 {offsets = [0, 32], sizes = [8, 32], strides = [1, 1]} : vector<8x128xf32> to vector<8x32xf32>
    %90 = arith.addf %88, %89 : vector<8x32xf32>
    %91 = arith.negf %90 : vector<8x32xf32>
    %92 = math.exp %91 : vector<8x32xf32>
    %cst_20 = arith.constant 1.000000e+00 : f32
    %93 = vector.broadcast %cst_20 : f32 to vector<8x32xf32>
    %94 = arith.addf %93, %92 : vector<8x32xf32>
    %95 = arith.divf %93, %94 : vector<8x32xf32>
    %96 = vector.extract_strided_slice %77 {offsets = [0, 64], sizes = [8, 32], strides = [1, 1]} : vector<8x128xf32> to vector<8x32xf32>
    %97 = vector.extract_strided_slice %79 {offsets = [0, 64], sizes = [8, 32], strides = [1, 1]} : vector<8x128xf32> to vector<8x32xf32>
    %98 = arith.addf %97, %15 : vector<8x32xf32>
    %99 = arith.mulf %87, %98 : vector<8x32xf32>
    %100 = arith.addf %96, %99 : vector<8x32xf32>
    %101 = math.tanh %100 : vector<8x32xf32>
    %cst_21 = arith.constant 1.000000e+00 : f32
    %102 = vector.broadcast %cst_21 : f32 to vector<8x32xf32>
    %103 = arith.subf %102, %95 : vector<8x32xf32>
    %104 = arith.mulf %103, %101 : vector<8x32xf32>
    %105 = arith.mulf %95, %76 : vector<8x32xf32>
    %106 = arith.addf %104, %105 : vector<8x32xf32>
    %107 = vector.extract_strided_slice %11 {offsets = [24, 0], sizes = [8, 128], strides = [1, 1]} : vector<64x128xf32> to vector<8x128xf32>
    %108 = arith.truncf %106 : vector<8x32xf32> to vector<8x32xbf16>
    %cst_22 = arith.constant dense<0.000000e+00> : vector<8x128xf32>
    %109 = tpu.matmul %108, %12, %cst_22 {dimension_numbers = #tpu.dot_dimension_numbers<[1], [0], [0], [1], [0, 0, 1, 1], [], []>} : vector<8x32xbf16>, vector<32x128xbf16>, vector<8x128xf32> -> vector<8x128xf32>
    %110 = vector.extract_strided_slice %107 {offsets = [0, 0], sizes = [8, 32], strides = [1, 1]} : vector<8x128xf32> to vector<8x32xf32>
    %111 = vector.extract_strided_slice %109 {offsets = [0, 0], sizes = [8, 32], strides = [1, 1]} : vector<8x128xf32> to vector<8x32xf32>
    %112 = arith.addf %110, %111 : vector<8x32xf32>
    %113 = arith.negf %112 : vector<8x32xf32>
    %114 = math.exp %113 : vector<8x32xf32>
    %cst_23 = arith.constant 1.000000e+00 : f32
    %115 = vector.broadcast %cst_23 : f32 to vector<8x32xf32>
    %116 = arith.addf %115, %114 : vector<8x32xf32>
    %117 = arith.divf %115, %116 : vector<8x32xf32>
    %118 = vector.extract_strided_slice %107 {offsets = [0, 32], sizes = [8, 32], strides = [1, 1]} : vector<8x128xf32> to vector<8x32xf32>
    %119 = vector.extract_strided_slice %109 {offsets = [0, 32], sizes = [8, 32], strides = [1, 1]} : vector<8x128xf32> to vector<8x32xf32>
    %120 = arith.addf %118, %119 : vector<8x32xf32>
    %121 = arith.negf %120 : vector<8x32xf32>
    %122 = math.exp %121 : vector<8x32xf32>
    %cst_24 = arith.constant 1.000000e+00 : f32
    %123 = vector.broadcast %cst_24 : f32 to vector<8x32xf32>
    %124 = arith.addf %123, %122 : vector<8x32xf32>
    %125 = arith.divf %123, %124 : vector<8x32xf32>
    %126 = vector.extract_strided_slice %107 {offsets = [0, 64], sizes = [8, 32], strides = [1, 1]} : vector<8x128xf32> to vector<8x32xf32>
    %127 = vector.extract_strided_slice %109 {offsets = [0, 64], sizes = [8, 32], strides = [1, 1]} : vector<8x128xf32> to vector<8x32xf32>
    %128 = arith.addf %127, %15 : vector<8x32xf32>
    %129 = arith.mulf %117, %128 : vector<8x32xf32>
    %130 = arith.addf %126, %129 : vector<8x32xf32>
    %131 = math.tanh %130 : vector<8x32xf32>
    %cst_25 = arith.constant 1.000000e+00 : f32
    %132 = vector.broadcast %cst_25 : f32 to vector<8x32xf32>
    %133 = arith.subf %132, %125 : vector<8x32xf32>
    %134 = arith.mulf %133, %131 : vector<8x32xf32>
    %135 = arith.mulf %125, %106 : vector<8x32xf32>
    %136 = arith.addf %134, %135 : vector<8x32xf32>
    %137 = vector.extract_strided_slice %11 {offsets = [32, 0], sizes = [8, 128], strides = [1, 1]} : vector<64x128xf32> to vector<8x128xf32>
    %138 = arith.truncf %136 : vector<8x32xf32> to vector<8x32xbf16>
    %cst_26 = arith.constant dense<0.000000e+00> : vector<8x128xf32>
    %139 = tpu.matmul %138, %12, %cst_26 {dimension_numbers = #tpu.dot_dimension_numbers<[1], [0], [0], [1], [0, 0, 1, 1], [], []>} : vector<8x32xbf16>, vector<32x128xbf16>, vector<8x128xf32> -> vector<8x128xf32>
    %140 = vector.extract_strided_slice %137 {offsets = [0, 0], sizes = [8, 32], strides = [1, 1]} : vector<8x128xf32> to vector<8x32xf32>
    %141 = vector.extract_strided_slice %139 {offsets = [0, 0], sizes = [8, 32], strides = [1, 1]} : vector<8x128xf32> to vector<8x32xf32>
    %142 = arith.addf %140, %141 : vector<8x32xf32>
    %143 = arith.negf %142 : vector<8x32xf32>
    %144 = math.exp %143 : vector<8x32xf32>
    %cst_27 = arith.constant 1.000000e+00 : f32
    %145 = vector.broadcast %cst_27 : f32 to vector<8x32xf32>
    %146 = arith.addf %145, %144 : vector<8x32xf32>
    %147 = arith.divf %145, %146 : vector<8x32xf32>
    %148 = vector.extract_strided_slice %137 {offsets = [0, 32], sizes = [8, 32], strides = [1, 1]} : vector<8x128xf32> to vector<8x32xf32>
    %149 = vector.extract_strided_slice %139 {offsets = [0, 32], sizes = [8, 32], strides = [1, 1]} : vector<8x128xf32> to vector<8x32xf32>
    %150 = arith.addf %148, %149 : vector<8x32xf32>
    %151 = arith.negf %150 : vector<8x32xf32>
    %152 = math.exp %151 : vector<8x32xf32>
    %cst_28 = arith.constant 1.000000e+00 : f32
    %153 = vector.broadcast %cst_28 : f32 to vector<8x32xf32>
    %154 = arith.addf %153, %152 : vector<8x32xf32>
    %155 = arith.divf %153, %154 : vector<8x32xf32>
    %156 = vector.extract_strided_slice %137 {offsets = [0, 64], sizes = [8, 32], strides = [1, 1]} : vector<8x128xf32> to vector<8x32xf32>
    %157 = vector.extract_strided_slice %139 {offsets = [0, 64], sizes = [8, 32], strides = [1, 1]} : vector<8x128xf32> to vector<8x32xf32>
    %158 = arith.addf %157, %15 : vector<8x32xf32>
    %159 = arith.mulf %147, %158 : vector<8x32xf32>
    %160 = arith.addf %156, %159 : vector<8x32xf32>
    %161 = math.tanh %160 : vector<8x32xf32>
    %cst_29 = arith.constant 1.000000e+00 : f32
    %162 = vector.broadcast %cst_29 : f32 to vector<8x32xf32>
    %163 = arith.subf %162, %155 : vector<8x32xf32>
    %164 = arith.mulf %163, %161 : vector<8x32xf32>
    %165 = arith.mulf %155, %136 : vector<8x32xf32>
    %166 = arith.addf %164, %165 : vector<8x32xf32>
    %167 = vector.extract_strided_slice %11 {offsets = [40, 0], sizes = [8, 128], strides = [1, 1]} : vector<64x128xf32> to vector<8x128xf32>
    %168 = arith.truncf %166 : vector<8x32xf32> to vector<8x32xbf16>
    %cst_30 = arith.constant dense<0.000000e+00> : vector<8x128xf32>
    %169 = tpu.matmul %168, %12, %cst_30 {dimension_numbers = #tpu.dot_dimension_numbers<[1], [0], [0], [1], [0, 0, 1, 1], [], []>} : vector<8x32xbf16>, vector<32x128xbf16>, vector<8x128xf32> -> vector<8x128xf32>
    %170 = vector.extract_strided_slice %167 {offsets = [0, 0], sizes = [8, 32], strides = [1, 1]} : vector<8x128xf32> to vector<8x32xf32>
    %171 = vector.extract_strided_slice %169 {offsets = [0, 0], sizes = [8, 32], strides = [1, 1]} : vector<8x128xf32> to vector<8x32xf32>
    %172 = arith.addf %170, %171 : vector<8x32xf32>
    %173 = arith.negf %172 : vector<8x32xf32>
    %174 = math.exp %173 : vector<8x32xf32>
    %cst_31 = arith.constant 1.000000e+00 : f32
    %175 = vector.broadcast %cst_31 : f32 to vector<8x32xf32>
    %176 = arith.addf %175, %174 : vector<8x32xf32>
    %177 = arith.divf %175, %176 : vector<8x32xf32>
    %178 = vector.extract_strided_slice %167 {offsets = [0, 32], sizes = [8, 32], strides = [1, 1]} : vector<8x128xf32> to vector<8x32xf32>
    %179 = vector.extract_strided_slice %169 {offsets = [0, 32], sizes = [8, 32], strides = [1, 1]} : vector<8x128xf32> to vector<8x32xf32>
    %180 = arith.addf %178, %179 : vector<8x32xf32>
    %181 = arith.negf %180 : vector<8x32xf32>
    %182 = math.exp %181 : vector<8x32xf32>
    %cst_32 = arith.constant 1.000000e+00 : f32
    %183 = vector.broadcast %cst_32 : f32 to vector<8x32xf32>
    %184 = arith.addf %183, %182 : vector<8x32xf32>
    %185 = arith.divf %183, %184 : vector<8x32xf32>
    %186 = vector.extract_strided_slice %167 {offsets = [0, 64], sizes = [8, 32], strides = [1, 1]} : vector<8x128xf32> to vector<8x32xf32>
    %187 = vector.extract_strided_slice %169 {offsets = [0, 64], sizes = [8, 32], strides = [1, 1]} : vector<8x128xf32> to vector<8x32xf32>
    %188 = arith.addf %187, %15 : vector<8x32xf32>
    %189 = arith.mulf %177, %188 : vector<8x32xf32>
    %190 = arith.addf %186, %189 : vector<8x32xf32>
    %191 = math.tanh %190 : vector<8x32xf32>
    %cst_33 = arith.constant 1.000000e+00 : f32
    %192 = vector.broadcast %cst_33 : f32 to vector<8x32xf32>
    %193 = arith.subf %192, %185 : vector<8x32xf32>
    %194 = arith.mulf %193, %191 : vector<8x32xf32>
    %195 = arith.mulf %185, %166 : vector<8x32xf32>
    %196 = arith.addf %194, %195 : vector<8x32xf32>
    %197 = vector.extract_strided_slice %11 {offsets = [48, 0], sizes = [8, 128], strides = [1, 1]} : vector<64x128xf32> to vector<8x128xf32>
    %198 = arith.truncf %196 : vector<8x32xf32> to vector<8x32xbf16>
    %cst_34 = arith.constant dense<0.000000e+00> : vector<8x128xf32>
    %199 = tpu.matmul %198, %12, %cst_34 {dimension_numbers = #tpu.dot_dimension_numbers<[1], [0], [0], [1], [0, 0, 1, 1], [], []>} : vector<8x32xbf16>, vector<32x128xbf16>, vector<8x128xf32> -> vector<8x128xf32>
    %200 = vector.extract_strided_slice %197 {offsets = [0, 0], sizes = [8, 32], strides = [1, 1]} : vector<8x128xf32> to vector<8x32xf32>
    %201 = vector.extract_strided_slice %199 {offsets = [0, 0], sizes = [8, 32], strides = [1, 1]} : vector<8x128xf32> to vector<8x32xf32>
    %202 = arith.addf %200, %201 : vector<8x32xf32>
    %203 = arith.negf %202 : vector<8x32xf32>
    %204 = math.exp %203 : vector<8x32xf32>
    %cst_35 = arith.constant 1.000000e+00 : f32
    %205 = vector.broadcast %cst_35 : f32 to vector<8x32xf32>
    %206 = arith.addf %205, %204 : vector<8x32xf32>
    %207 = arith.divf %205, %206 : vector<8x32xf32>
    %208 = vector.extract_strided_slice %197 {offsets = [0, 32], sizes = [8, 32], strides = [1, 1]} : vector<8x128xf32> to vector<8x32xf32>
    %209 = vector.extract_strided_slice %199 {offsets = [0, 32], sizes = [8, 32], strides = [1, 1]} : vector<8x128xf32> to vector<8x32xf32>
    %210 = arith.addf %208, %209 : vector<8x32xf32>
    %211 = arith.negf %210 : vector<8x32xf32>
    %212 = math.exp %211 : vector<8x32xf32>
    %cst_36 = arith.constant 1.000000e+00 : f32
    %213 = vector.broadcast %cst_36 : f32 to vector<8x32xf32>
    %214 = arith.addf %213, %212 : vector<8x32xf32>
    %215 = arith.divf %213, %214 : vector<8x32xf32>
    %216 = vector.extract_strided_slice %197 {offsets = [0, 64], sizes = [8, 32], strides = [1, 1]} : vector<8x128xf32> to vector<8x32xf32>
    %217 = vector.extract_strided_slice %199 {offsets = [0, 64], sizes = [8, 32], strides = [1, 1]} : vector<8x128xf32> to vector<8x32xf32>
    %218 = arith.addf %217, %15 : vector<8x32xf32>
    %219 = arith.mulf %207, %218 : vector<8x32xf32>
    %220 = arith.addf %216, %219 : vector<8x32xf32>
    %221 = math.tanh %220 : vector<8x32xf32>
    %cst_37 = arith.constant 1.000000e+00 : f32
    %222 = vector.broadcast %cst_37 : f32 to vector<8x32xf32>
    %223 = arith.subf %222, %215 : vector<8x32xf32>
    %224 = arith.mulf %223, %221 : vector<8x32xf32>
    %225 = arith.mulf %215, %196 : vector<8x32xf32>
    %226 = arith.addf %224, %225 : vector<8x32xf32>
    %227 = vector.extract_strided_slice %11 {offsets = [56, 0], sizes = [8, 128], strides = [1, 1]} : vector<64x128xf32> to vector<8x128xf32>
    %228 = arith.truncf %226 : vector<8x32xf32> to vector<8x32xbf16>
    %cst_38 = arith.constant dense<0.000000e+00> : vector<8x128xf32>
    %229 = tpu.matmul %228, %12, %cst_38 {dimension_numbers = #tpu.dot_dimension_numbers<[1], [0], [0], [1], [0, 0, 1, 1], [], []>} : vector<8x32xbf16>, vector<32x128xbf16>, vector<8x128xf32> -> vector<8x128xf32>
    %230 = vector.extract_strided_slice %227 {offsets = [0, 0], sizes = [8, 32], strides = [1, 1]} : vector<8x128xf32> to vector<8x32xf32>
    %231 = vector.extract_strided_slice %229 {offsets = [0, 0], sizes = [8, 32], strides = [1, 1]} : vector<8x128xf32> to vector<8x32xf32>
    %232 = arith.addf %230, %231 : vector<8x32xf32>
    %233 = arith.negf %232 : vector<8x32xf32>
    %234 = math.exp %233 : vector<8x32xf32>
    %cst_39 = arith.constant 1.000000e+00 : f32
    %235 = vector.broadcast %cst_39 : f32 to vector<8x32xf32>
    %236 = arith.addf %235, %234 : vector<8x32xf32>
    %237 = arith.divf %235, %236 : vector<8x32xf32>
    %238 = vector.extract_strided_slice %227 {offsets = [0, 32], sizes = [8, 32], strides = [1, 1]} : vector<8x128xf32> to vector<8x32xf32>
    %239 = vector.extract_strided_slice %229 {offsets = [0, 32], sizes = [8, 32], strides = [1, 1]} : vector<8x128xf32> to vector<8x32xf32>
    %240 = arith.addf %238, %239 : vector<8x32xf32>
    %241 = arith.negf %240 : vector<8x32xf32>
    %242 = math.exp %241 : vector<8x32xf32>
    %cst_40 = arith.constant 1.000000e+00 : f32
    %243 = vector.broadcast %cst_40 : f32 to vector<8x32xf32>
    %244 = arith.addf %243, %242 : vector<8x32xf32>
    %245 = arith.divf %243, %244 : vector<8x32xf32>
    %246 = vector.extract_strided_slice %227 {offsets = [0, 64], sizes = [8, 32], strides = [1, 1]} : vector<8x128xf32> to vector<8x32xf32>
    %247 = vector.extract_strided_slice %229 {offsets = [0, 64], sizes = [8, 32], strides = [1, 1]} : vector<8x128xf32> to vector<8x32xf32>
    %248 = arith.addf %247, %15 : vector<8x32xf32>
    %249 = arith.mulf %237, %248 : vector<8x32xf32>
    %250 = arith.addf %246, %249 : vector<8x32xf32>
    %251 = math.tanh %250 : vector<8x32xf32>
    %cst_41 = arith.constant 1.000000e+00 : f32
    %252 = vector.broadcast %cst_41 : f32 to vector<8x32xf32>
    %253 = arith.subf %252, %245 : vector<8x32xf32>
    %254 = arith.mulf %253, %251 : vector<8x32xf32>
    %255 = arith.mulf %245, %226 : vector<8x32xf32>
    %256 = arith.addf %254, %255 : vector<8x32xf32>
    %257 = arith.truncf %256 : vector<8x32xf32> to vector<8x32xbf16>
    %c0_42 = arith.constant 0 : index
    %c0_43 = arith.constant 0 : index
    %258 = vector.load %arg5[%c0_42, %c0_43] : memref<32x2xbf16, #tpu.memory_space<vmem>>, vector<32x2xbf16>
    %cst_44 = arith.constant dense<0.000000e+00> : vector<8x2xf32>
    %259 = tpu.matmul %257, %258, %cst_44 {dimension_numbers = #tpu.dot_dimension_numbers<[1], [0], [0], [1], [0, 0, 1, 1], [], []>} : vector<8x32xbf16>, vector<32x2xbf16>, vector<8x2xf32> -> vector<8x2xf32>
    %c0_45 = arith.constant 0 : index
    %c0_46 = arith.constant 0 : index
    %260 = vector.load %arg6[%c0_45, %c0_46] : memref<1x2xf32, #tpu.memory_space<vmem>>, vector<1x2xf32>
    %261 = vector.broadcast %260 : vector<1x2xf32> to vector<8x2xf32>
    %262 = arith.addf %259, %261 : vector<8x2xf32>
    %263 = vector.extract_strided_slice %262 {offsets = [0, 0], sizes = [2, 2], strides = [1, 1]} : vector<8x2xf32> to vector<2x2xf32>
    %264 = arith.negf %263 : vector<2x2xf32>
    %265 = math.exp %264 : vector<2x2xf32>
    %cst_47 = arith.constant 1.000000e+00 : f32
    %266 = vector.broadcast %cst_47 : f32 to vector<2x2xf32>
    %267 = arith.addf %266, %265 : vector<2x2xf32>
    %268 = arith.divf %266, %267 : vector<2x2xf32>
    %c0_48 = arith.constant 0 : index
    %c0_49 = arith.constant 0 : index
    %269 = vector.load %arg7[%c0_48, %c0_49] : memref<2x2xf32, #tpu.memory_space<vmem>>, vector<2x2xf32>
    tpu.vector_store %arg7[%c0_48, %c0_49], %268 {strides = array<i32>} : memref<2x2xf32, #tpu.memory_space<vmem>>, vector<2x2xf32>,
    return
  }
}

</mosaic_0001>

<llo_original>
// kernel: tpu_custom_call.1
$region0: #{tpu_custom_call.1}
  #allocation0 [shape = 'u32[]', space=smem, size = 0x4, offset = 0x4, fixed_abs, tag = 'smem constant byte address 0x4 - core index']
  #allocation1 [shape = 'u32[144,128]{1,0:T(1,128)}', space=vmem, size = 0x12000, scoped, tag = 'internal scratch']
  %s0 = inlined_call_operand.vmem [shape: s32[64,1], index: 0, kind: input, shape index: {}]
  %s1 = inlined_call_operand.vmem [shape: bf16[64,128], index: 1, kind: input, shape index: {}]
  %s2 = inlined_call_operand.vmem [shape: bf16[32,128], index: 2, kind: input, shape index: {}]
  %s3 = inlined_call_operand.vmem [shape: f32[1,128], index: 3, kind: input, shape index: {}]
  %s4 = inlined_call_operand.vmem [shape: f32[1,32], index: 4, kind: input, shape index: {}]
  %s5 = inlined_call_operand.vmem [shape: bf16[32,2], index: 5, kind: input, shape index: {}]
  %s6 = inlined_call_operand.vmem [shape: f32[1,2], index: 6, kind: input, shape index: {}]
  %s7 = inlined_call_operand.hbm [shape: f32[2,2], index: 7, kind: output, shape index: {}]
  %s8 = sld [smem:[#allocation0]]
  $region38: #{tpu_custom_call.1} parent=0
    _
  %s10 = ssub.s32 1, %s8
  %s11 = scalar_select 0, %s10, %s8
  $region1: #{tpu_custom_call.1} parent=0
    #allocation2 [shape = 'u8[1024]{0}', space=vmem, size = 0x400, scoped, tag = 'output window, operand 0, single buffered']
    #allocation3 [shape = 's32[1]{0}', space=sflag, size = 0x4, scoped, tag = 'scoped memory for tpu_custom_call.1']
    %12 = vsyncpa [#allocation3], 0
    // Predicated region
    $region2: #{tpu_custom_call.1} parent=1 // pred_check
      _
    $region3: #{tpu_custom_call.1} parent=1 // pred_check_branch
      %14 = sbr.rel (0) target = $region5
    $region4: #{tpu_custom_call.1} parent=1 // pred_region
      _
    $region5: #{tpu_custom_call.1} parent=1 // pred_fallthru
      _
    // Predicated region
    $region6: #{tpu_custom_call.1} parent=1 // pred_check
      _
    $region7: #{tpu_custom_call.1} parent=1 // pred_check_branch
      %16 = sbr.rel (0) target = $region9
    $region8: #{tpu_custom_call.1} parent=1 // pred_region
      _
    $region9: #{tpu_custom_call.1} parent=1 // pred_fallthru
      _
    // Predicated region
    $region10: #{tpu_custom_call.1} parent=1 // pred_check
      _
    $region11: #{tpu_custom_call.1} parent=1 // pred_check_branch
      %18 = sbr.rel (0) target = $region13
    $region12: #{tpu_custom_call.1} parent=1 // pred_region
      _
    $region13: #{tpu_custom_call.1} parent=1 // pred_fallthru
      _
    // Predicated region
    $region14: #{tpu_custom_call.1} parent=1 // pred_check
      _
    $region15: #{tpu_custom_call.1} parent=1 // pred_check_branch
      %20 = sbr.rel (0) target = $region17
    $region16: #{tpu_custom_call.1} parent=1 // pred_region
      _
    $region17: #{tpu_custom_call.1} parent=1 // pred_fallthru
      _
    // Predicated region
    $region18: #{tpu_custom_call.1} parent=1 // pred_check
      _
    $region19: #{tpu_custom_call.1} parent=1 // pred_check_branch
      %22 = sbr.rel (0) target = $region21
    $region20: #{tpu_custom_call.1} parent=1 // pred_region
      _
    $region21: #{tpu_custom_call.1} parent=1 // pred_fallthru
      _
    // Predicated region
    $region22: #{tpu_custom_call.1} parent=1 // pred_check
      _
    $region23: #{tpu_custom_call.1} parent=1 // pred_check_branch
      %24 = sbr.rel (0) target = $region25
    $region24: #{tpu_custom_call.1} parent=1 // pred_region
      _
    $region25: #{tpu_custom_call.1} parent=1 // pred_fallthru
      _
    // Predicated region
    $region26: #{tpu_custom_call.1} parent=1 // pred_check
      _
    $region27: #{tpu_custom_call.1} parent=1 // pred_check_branch
      %26 = sbr.rel (0) target = $region29
    $region28: #{tpu_custom_call.1} parent=1 // pred_region
      _
    $region29: #{tpu_custom_call.1} parent=1 // pred_fallthru
      _
    %v28 = vld [vmem:[%s0] sm:$0xff]
    %v29 = vld [vmem:[%s0 + $0x8] sm:$0xff]
    %v30 = vld [vmem:[%s0 + $0x10] sm:$0xff]
    %v31 = vld [vmem:[%s0 + $0x18] sm:$0xff]
    %v32 = vld [vmem:[%s0 + $0x20] sm:$0xff]
    %v33 = vld [vmem:[%s0 + $0x28] sm:$0xff]
    %v34 = vld [vmem:[%s0 + $0x30] sm:$0xff]
    %v35 = vld [vmem:[%s0 + $0x38] sm:$0xff]
    %v36 = vlaneseq
    %v37 = vand.u32 %v36, 127
    %38 = vset.pattern.permute.xlu0 0
    %39 = vperm.xlu0 %38, %v28
    %v40 = vpop.permute.xlu0 %39
    %41 = vset.pattern.permute.xlu0 0
    %42 = vperm.xlu0 %41, %v29
    %v43 = vpop.permute.xlu0 %42
    %44 = vset.pattern.permute.xlu0 0
    %45 = vperm.xlu0 %44, %v30
    %v46 = vpop.permute.xlu0 %45
    %47 = vset.pattern.permute.xlu0 0
    %48 = vperm.xlu0 %47, %v31
    %v49 = vpop.permute.xlu0 %48
    %50 = vset.pattern.permute.xlu0 0
    %51 = vperm.xlu0 %50, %v32
    %v52 = vpop.permute.xlu0 %51
    %53 = vset.pattern.permute.xlu0 0
    %54 = vperm.xlu0 %53, %v33
    %v55 = vpop.permute.xlu0 %54
    %56 = vset.pattern.permute.xlu0 0
    %57 = vperm.xlu0 %56, %v34
    %v58 = vpop.permute.xlu0 %57
    %59 = vset.pattern.permute.xlu0 0
    %60 = vperm.xlu0 %59, %v35
    %v61 = vpop.permute.xlu0 %60
    %vm62 = vcmp.eq.s32.totalorder %v37, %v40
    %vm63 = vcmp.eq.s32.totalorder %v37, %v43
    %vm64 = vcmp.eq.s32.totalorder %v37, %v46
    %vm65 = vcmp.eq.s32.totalorder %v37, %v49
    %vm66 = vcmp.eq.s32.totalorder %v37, %v52
    %vm67 = vcmp.eq.s32.totalorder %v37, %v55
    %vm68 = vcmp.eq.s32.totalorder %v37, %v58
    %vm69 = vcmp.eq.s32.totalorder %v37, %v61
    %v70 = vsel %vm62, 1, 0
    %v71 = vsel %vm63, 1, 0
    %v72 = vsel %vm64, 1, 0
    %v73 = vsel %vm65, 1, 0
    %v74 = vsel %vm66, 1, 0
    %v75 = vsel %vm67, 1, 0
    %v76 = vsel %vm68, 1, 0
    %v77 = vsel %vm69, 1, 0
    %v78 = vcvt.s32.f32 %v70
    %v79 = vcvt.s32.f32 %v71
    %v80 = vcvt.s32.f32 %v72
    %v81 = vcvt.s32.f32 %v73
    %v82 = vcvt.s32.f32 %v74
    %v83 = vcvt.s32.f32 %v75
    %v84 = vcvt.s32.f32 %v76
    %v85 = vcvt.s32.f32 %v77
    %v86 = vpack.c.bf16 %v79, %v78
    %v87 = vpack.c.bf16 %v81, %v80
    %v88 = vpack.c.bf16 %v83, %v82
    %v89 = vpack.c.bf16 %v85, %v84
    %v90 = vld [vmem:[%s1] sm:$0xf]
    %v91 = vld [vmem:[%s1 + $0x4] sm:$0xf]
    %v92 = vld [vmem:[%s1 + $0x8] sm:$0xf]
    %v93 = vld [vmem:[%s1 + $0xc] sm:$0xf]
    %v94 = vld [vmem:[%s1 + $0x10] sm:$0xf]
    %v95 = vld [vmem:[%s1 + $0x14] sm:$0xf]
    %v96 = vld [vmem:[%s1 + $0x18] sm:$0xf]
    %v97 = vld [vmem:[%s1 + $0x1c] sm:$0xf]
    %v98 = vld [vmem:[%s3] sm:$0x1]
    %v100 = vlaneseq
    %v101 = vshrl.u32 %v100, 7
    %v102 = vsub.s32 0, %v101
    %v103 = vrot.slane %v98, %v102
    %v113 = vunpack.c.l.b16 %v90
    %v114 = vunpack.c.l.b16 %v91
    %v115 = vunpack.c.l.b16 %v92
    %v116 = vunpack.c.l.b16 %v93
    %v117 = vunpack.c.l.b16 %v94
    %v118 = vunpack.c.l.b16 %v95
    %v119 = vunpack.c.l.b16 %v96
    %v120 = vunpack.c.l.b16 %v97
    %v121 = vpack.c.b16 %v114, %v113
    %v122 = vpack.c.b16 %v116, %v115
    %v123 = vpack.c.b16 %v118, %v117
    %v124 = vpack.c.b16 %v120, %v119
    %vm129 = vcmask 523264
    %v131 = vsel %vm129, %v86, 0
    %v134 = vsel %vm129, %v87, 0
    %v137 = vsel %vm129, %v88, 0
    %v140 = vsel %vm129, %v89, 0
    %142 = vmatprep.subr.bf16.mxu0 0
    %143 = vmatpush1.bf16.msra.mxu0 %v121
    %144 = vmatprep.subr.bf16.mxu0 0
    %145 = vmatpush1.bf16.msra.mxu0 %v122
    %146 = vmatprep.subr.bf16.mxu0 0
    %147 = vmatpush1.bf16.msra.mxu0 %v123
    %148 = vmatprep.subr.bf16.mxu0 0
    %149 = vmatpush1.bf16.msra.mxu0 %v124
    %150 = vmatprep.subr.bf16.mxu0 0
    %151 = vmatpush1.bf16.msra.mxu0 0
    %152 = vmatprep.subr.bf16.mxu0 0
    %153 = vmatpush1.bf16.msra.mxu0 0
    %154 = vmatprep.subr.bf16.mxu0 0
    %155 = vmatpush1.bf16.msra.mxu0 0
    %156 = vmatprep.subr.bf16.mxu0 0
    %157 = vmatpush1.bf16.msra.mxu0 0
    %158 = vmatprep.subr.bf16.mxu0 0
    %159 = vmatpush1.bf16.msra.mxu0 0
    %160 = vmatprep.subr.bf16.mxu0 0
    %161 = vmatpush1.bf16.msra.mxu0 0
    %162 = vmatprep.subr.bf16.mxu0 0
    %163 = vmatpush1.bf16.msra.mxu0 0
    %164 = vmatprep.subr.bf16.mxu0 0
    %165 = vmatpush1.bf16.msra.mxu0 0
    %166 = vmatprep.subr.bf16.mxu0 0
    %167 = vmatpush1.bf16.msra.mxu0 0
    %168 = vmatprep.subr.bf16.mxu0 0
    %169 = vmatpush1.bf16.msra.mxu0 0
    %170 = vmatprep.subr.bf16.mxu0 0
    %171 = vmatpush1.bf16.msra.mxu0 0
    %172 = vmatprep.subr.bf16.mxu0 0
    %173 = vmatpush1.bf16.msra.mxu0 0
    %174 = vmatprep.mubr.bf16.mxu0 0
    %175 = vmatmul.mubr.bf16.gmra.mrb[0].mxu0 %v131
    %v176 = vpop.f32.mrb[0].mxu0
    %v177 = vadd.f32 %v103, %v176
    %v178 = vpop.f32.mrb[0].mxu0
    %v179 = vpop.f32.mrb[0].mxu0
    %v180 = vadd.f32 %v103, %v179
    %v181 = vpop.f32.mrb[0].mxu0
    %182 = vmatprep.mubr.bf16.mxu0 0
    %183 = vmatmul.mubr.bf16.gmra.mrb[0].mxu0 %v134
    %v184 = vpop.f32.mrb[0].mxu0
    %v185 = vadd.f32 %v103, %v184
    %v186 = vpop.f32.mrb[0].mxu0
    %v187 = vpop.f32.mrb[0].mxu0
    %v188 = vadd.f32 %v103, %v187
    %v189 = vpop.f32.mrb[0].mxu0
    %190 = vmatprep.mubr.bf16.mxu0 0
    %191 = vmatmul.mubr.bf16.gmra.mrb[0].mxu0 %v137
    %v192 = vpop.f32.mrb[0].mxu0
    %v193 = vadd.f32 %v103, %v192
    %v194 = vpop.f32.mrb[0].mxu0
    %v195 = vpop.f32.mrb[0].mxu0
    %v196 = vadd.f32 %v103, %v195
    %v197 = vpop.f32.mrb[0].mxu0
    %198 = vmatprep.mubr.bf16.mxu0 0
    %199 = vmatmul.mubr.bf16.gmra.mrb[0].mxu0 %v140
    %v200 = vpop.f32.mrb[0].mxu0
    %v201 = vadd.f32 %v103, %v200
    %v202 = vpop.f32.mrb[0].mxu0
    %v203 = vpop.f32.mrb[0].mxu0
    %v204 = vadd.f32 %v103, %v203
    %v205 = vpop.f32.mrb[0].mxu0
    %206 = vdwg.mxu0
    %v207 = vld [vmem:[%s2] sm:$0xf]
    %v208 = vld [vmem:[%s2 + $0x4] sm:$0xf]
    %v209 = vld [vmem:[%s2 + $0x8] sm:$0xf]
    %v210 = vld [vmem:[%s2 + $0xc] sm:$0xf]
    %v211 = vld [vmem:[%s4] sm:$0x1]
    %v213 = vlaneseq
    %v214 = vshrl.u32 %v213, 7
    %v215 = vsub.s32 0, %v214
    %v216 = vrot.slane %v211, %v215
    %v221 = vunpack.c.l.b16 %v207
    %v222 = vunpack.c.l.b16 %v208
    %v223 = vunpack.c.l.b16 %v209
    %v224 = vunpack.c.l.b16 %v210
    %v225 = vpack.c.b16 %v222, %v221
    %v226 = vpack.c.b16 %v224, %v223
    %vm229 = vcmask 261120
    %v231 = vsel %vm229, 0, 0
    %233 = vmatprep.subr.bf16.mxu0 0
    %234 = vmatpush1.bf16.msra.mxu0 %v225
    %235 = vmatprep.subr.bf16.mxu0 0
    %236 = vmatpush1.bf16.msra.mxu0 %v226
    %237 = vmatprep.subr.bf16.mxu0 0
    %238 = vmatpush1.bf16.msra.mxu0 0
    %239 = vmatprep.subr.bf16.mxu0 0
    %240 = vmatpush1.bf16.msra.mxu0 0
    %241 = vmatprep.subr.bf16.mxu0 0
    %242 = vmatpush1.bf16.msra.mxu0 0
    %243 = vmatprep.subr.bf16.mxu0 0
    %244 = vmatpush1.bf16.msra.mxu0 0
    %245 = vmatprep.subr.bf16.mxu0 0
    %246 = vmatpush1.bf16.msra.mxu0 0
    %247 = vmatprep.subr.bf16.mxu0 0
    %248 = vmatpush1.bf16.msra.mxu0 0
    %249 = vmatprep.subr.bf16.mxu0 0
    %250 = vmatpush1.bf16.msra.mxu0 0
    %251 = vmatprep.subr.bf16.mxu0 0
    %252 = vmatpush1.bf16.msra.mxu0 0
    %253 = vmatprep.subr.bf16.mxu0 0
    %254 = vmatpush1.bf16.msra.mxu0 0
    %255 = vmatprep.subr.bf16.mxu0 0
    %256 = vmatpush1.bf16.msra.mxu0 0
    %257 = vmatprep.subr.bf16.mxu0 0
    %258 = vmatpush1.bf16.msra.mxu0 0
    %259 = vmatprep.subr.bf16.mxu0 0
    %260 = vmatpush1.bf16.msra.mxu0 0
    %261 = vmatprep.subr.bf16.mxu0 0
    %262 = vmatpush1.bf16.msra.mxu0 0
    %263 = vmatprep.subr.bf16.mxu0 0
    %264 = vmatpush1.bf16.msra.mxu0 0
    %265 = vmatprep.mubr.bf16.mxu0 0
    %266 = vmatmul.mubr.bf16.gmra.mrb[0].mxu0 %v231
    %v267 = vpop.f32.mrb[0].mxu0
    %v268 = vadd.f32 0.0, %v267
    %v269 = vpop.f32.mrb[0].mxu0
    %v270 = vpop.f32.mrb[0].mxu0
    %v271 = vpop.f32.mrb[0].mxu0
    %272 = vdwg.mxu0
    %v273 = vadd.f32 %v177, %v268
    %v274 = vxor.u32 %v273, 2147483648
    %v275 = vmul.f32 %v274, 1.442695
    %v276 = vpow.pop %v275
    %v277 = vadd.f32 %v276, 1.0
    %v278 = vrcp.pop %v277
    %v279 = vmul.f32 1.0, %v278
    %280 = vrot.lane.b32.xlu0 %v216, 64
    %v281 = vpop.permute.xlu0 %280
    %v283 = vadd.f32 %v268, %v281
    %285 = vrot.lane.b32.xlu0 %v283, 64
    %v286 = vpop.permute.xlu0 %285
    %v288 = vmul.f32 %v279, %v286
    %290 = vrot.lane.b32.xlu0 %v288, 64
    %v291 = vpop.permute.xlu0 %290
    %v293 = vadd.f32 %v177, %v291
    %v294 = vtanh.pop %v293
    %v295 = vsub.f32 1.0, %v279
    %297 = vrot.lane.b32.xlu0 %v294, 96
    %v298 = vpop.permute.xlu0 %297
    %v300 = vmul.f32 %v295, %v298
    %v301 = vmul.f32 %v279, 0.0
    %v302 = vadd.f32 %v300, %v301
    %v303 = vpack.c.bf16 %v302, %v302
    %305 = vrot.lane.b32.xlu0 %v303, 96
    %v306 = vpop.permute.xlu0 %305
    %v308 = vsel %vm229, %v306, 0
    %310 = vmatprep.subr.bf16.mxu0 0
    %311 = vmatpush1.bf16.msra.mxu0 %v225
    %312 = vmatprep.subr.bf16.mxu0 0
    %313 = vmatpush1.bf16.msra.mxu0 %v226
    %314 = vmatprep.subr.bf16.mxu0 0
    %315 = vmatpush1.bf16.msra.mxu0 0
    %316 = vmatprep.subr.bf16.mxu0 0
    %317 = vmatpush1.bf16.msra.mxu0 0
    %318 = vmatprep.subr.bf16.mxu0 0
    %319 = vmatpush1.bf16.msra.mxu0 0
    %320 = vmatprep.subr.bf16.mxu0 0
    %321 = vmatpush1.bf16.msra.mxu0 0
    %322 = vmatprep.subr.bf16.mxu0 0
    %323 = vmatpush1.bf16.msra.mxu0 0
    %324 = vmatprep.subr.bf16.mxu0 0
    %325 = vmatpush1.bf16.msra.mxu0 0
    %326 = vmatprep.subr.bf16.mxu0 0
    %327 = vmatpush1.bf16.msra.mxu0 0
    %328 = vmatprep.subr.bf16.mxu0 0
    %329 = vmatpush1.bf16.msra.mxu0 0
    %330 = vmatprep.subr.bf16.mxu0 0
    %331 = vmatpush1.bf16.msra.mxu0 0
    %332 = vmatprep.subr.bf16.mxu0 0
    %333 = vmatpush1.bf16.msra.mxu0 0
    %334 = vmatprep.subr.bf16.mxu0 0
    %335 = vmatpush1.bf16.msra.mxu0 0
    %336 = vmatprep.subr.bf16.mxu0 0
    %337 = vmatpush1.bf16.msra.mxu0 0
    %338 = vmatprep.subr.bf16.mxu0 0
    %339 = vmatpush1.bf16.msra.mxu0 0
    %340 = vmatprep.subr.bf16.mxu0 0
    %341 = vmatpush1.bf16.msra.mxu0 0
    %342 = vmatprep.mubr.bf16.mxu0 0
    %343 = vmatmul.mubr.bf16.gmra.mrb[0].mxu0 %v308
    %v344 = vpop.f32.mrb[0].mxu0
    %v345 = vadd.f32 0.0, %v344
    %v346 = vpop.f32.mrb[0].mxu0
    %v347 = vpop.f32.mrb[0].mxu0
    %v348 = vpop.f32.mrb[0].mxu0
    %349 = vdwg.mxu0
    %v350 = vadd.f32 %v180, %v345
    %v351 = vxor.u32 %v350, 2147483648
    %v352 = vmul.f32 %v351, 1.442695
    %v353 = vpow.pop %v352
    %v354 = vadd.f32 %v353, 1.0
    %v355 = vrcp.pop %v354
    %v356 = vmul.f32 1.0, %v355
    %v357 = vadd.f32 %v345, %v281
    %359 = vrot.lane.b32.xlu0 %v357, 64
    %v360 = vpop.permute.xlu0 %359
    %v362 = vmul.f32 %v356, %v360
    %364 = vrot.lane.b32.xlu0 %v362, 64
    %v365 = vpop.permute.xlu0 %364
    %v367 = vadd.f32 %v180, %v365
    %v368 = vtanh.pop %v367
    %v369 = vsub.f32 1.0, %v356
    %371 = vrot.lane.b32.xlu0 %v368, 96
    %v372 = vpop.permute.xlu0 %371
    %v374 = vmul.f32 %v369, %v372
    %v375 = vmul.f32 %v356, %v302
    %v376 = vadd.f32 %v374, %v375
    %v377 = vpack.c.bf16 %v376, %v376
    %379 = vrot.lane.b32.xlu0 %v377, 96
    %v380 = vpop.permute.xlu0 %379
    %v382 = vsel %vm229, %v380, 0
    %384 = vmatprep.subr.bf16.mxu0 0
    %385 = vmatpush1.bf16.msra.mxu0 %v225
    %386 = vmatprep.subr.bf16.mxu0 0
    %387 = vmatpush1.bf16.msra.mxu0 %v226
    %388 = vmatprep.subr.bf16.mxu0 0
    %389 = vmatpush1.bf16.msra.mxu0 0
    %390 = vmatprep.subr.bf16.mxu0 0
    %391 = vmatpush1.bf16.msra.mxu0 0
    %392 = vmatprep.subr.bf16.mxu0 0
    %393 = vmatpush1.bf16.msra.mxu0 0
    %394 = vmatprep.subr.bf16.mxu0 0
    %395 = vmatpush1.bf16.msra.mxu0 0
    %396 = vmatprep.subr.bf16.mxu0 0
    %397 = vmatpush1.bf16.msra.mxu0 0
    %398 = vmatprep.subr.bf16.mxu0 0
    %399 = vmatpush1.bf16.msra.mxu0 0
    %400 = vmatprep.subr.bf16.mxu0 0
    %401 = vmatpush1.bf16.msra.mxu0 0
    %402 = vmatprep.subr.bf16.mxu0 0
    %403 = vmatpush1.bf16.msra.mxu0 0
    %404 = vmatprep.subr.bf16.mxu0 0
    %405 = vmatpush1.bf16.msra.mxu0 0
    %406 = vmatprep.subr.bf16.mxu0 0
    %407 = vmatpush1.bf16.msra.mxu0 0
    %408 = vmatprep.subr.bf16.mxu0 0
    %409 = vmatpush1.bf16.msra.mxu0 0
    %410 = vmatprep.subr.bf16.mxu0 0
    %411 = vmatpush1.bf16.msra.mxu0 0
    %412 = vmatprep.subr.bf16.mxu0 0
    %413 = vmatpush1.bf16.msra.mxu0 0
    %414 = vmatprep.subr.bf16.mxu0 0
    %415 = vmatpush1.bf16.msra.mxu0 0
    %416 = vmatprep.mubr.bf16.mxu0 0
    %417 = vmatmul.mubr.bf16.gmra.mrb[0].mxu0 %v382
    %v418 = vpop.f32.mrb[0].mxu0
    %v419 = vadd.f32 0.0, %v418
    %v420 = vpop.f32.mrb[0].mxu0
    %v421 = vpop.f32.mrb[0].mxu0
    %v422 = vpop.f32.mrb[0].mxu0
    %423 = vdwg.mxu0
    %v424 = vadd.f32 %v185, %v419
    %v425 = vxor.u32 %v424, 2147483648
    %v426 = vmul.f32 %v425, 1.442695
    %v427 = vpow.pop %v426
    %v428 = vadd.f32 %v427, 1.0
    %v429 = vrcp.pop %v428
    %v430 = vmul.f32 1.0, %v429
    %v431 = vadd.f32 %v419, %v281
    %433 = vrot.lane.b32.xlu0 %v431, 64
    %v434 = vpop.permute.xlu0 %433
    %v436 = vmul.f32 %v430, %v434
    %438 = vrot.lane.b32.xlu0 %v436, 64
    %v439 = vpop.permute.xlu0 %438
    %v441 = vadd.f32 %v185, %v439
    %v442 = vtanh.pop %v441
    %v443 = vsub.f32 1.0, %v430
    %445 = vrot.lane.b32.xlu0 %v442, 96
    %v446 = vpop.permute.xlu0 %445
    %v448 = vmul.f32 %v443, %v446
    %v449 = vmul.f32 %v430, %v376
    %v450 = vadd.f32 %v448, %v449
    %v451 = vpack.c.bf16 %v450, %v450
    %453 = vrot.lane.b32.xlu0 %v451, 96
    %v454 = vpop.permute.xlu0 %453
    %v456 = vsel %vm229, %v454, 0
    %458 = vmatprep.subr.bf16.mxu0 0
    %459 = vmatpush1.bf16.msra.mxu0 %v225
    %460 = vmatprep.subr.bf16.mxu0 0
    %461 = vmatpush1.bf16.msra.mxu0 %v226
    %462 = vmatprep.subr.bf16.mxu0 0
    %463 = vmatpush1.bf16.msra.mxu0 0
    %464 = vmatprep.subr.bf16.mxu0 0
    %465 = vmatpush1.bf16.msra.mxu0 0
    %466 = vmatprep.subr.bf16.mxu0 0
    %467 = vmatpush1.bf16.msra.mxu0 0
    %468 = vmatprep.subr.bf16.mxu0 0
    %469 = vmatpush1.bf16.msra.mxu0 0
    %470 = vmatprep.subr.bf16.mxu0 0
    %471 = vmatpush1.bf16.msra.mxu0 0
    %472 = vmatprep.subr.bf16.mxu0 0
    %473 = vmatpush1.bf16.msra.mxu0 0
    %474 = vmatprep.subr.bf16.mxu0 0
    %475 = vmatpush1.bf16.msra.mxu0 0
    %476 = vmatprep.subr.bf16.mxu0 0
    %477 = vmatpush1.bf16.msra.mxu0 0
    %478 = vmatprep.subr.bf16.mxu0 0
    %479 = vmatpush1.bf16.msra.mxu0 0
    %480 = vmatprep.subr.bf16.mxu0 0
    %481 = vmatpush1.bf16.msra.mxu0 0
    %482 = vmatprep.subr.bf16.mxu0 0
    %483 = vmatpush1.bf16.msra.mxu0 0
    %484 = vmatprep.subr.bf16.mxu0 0
    %485 = vmatpush1.bf16.msra.mxu0 0
    %486 = vmatprep.subr.bf16.mxu0 0
    %487 = vmatpush1.bf16.msra.mxu0 0
    %488 = vmatprep.subr.bf16.mxu0 0
    %489 = vmatpush1.bf16.msra.mxu0 0
    %490 = vmatprep.mubr.bf16.mxu0 0
    %491 = vmatmul.mubr.bf16.gmra.mrb[0].mxu0 %v456
    %v492 = vpop.f32.mrb[0].mxu0
    %v493 = vadd.f32 0.0, %v492
    %v494 = vpop.f32.mrb[0].mxu0
    %v495 = vpop.f32.mrb[0].mxu0
    %v496 = vpop.f32.mrb[0].mxu0
    %497 = vdwg.mxu0
    %v498 = vadd.f32 %v188, %v493
    %v499 = vxor.u32 %v498, 2147483648
    %v500 = vmul.f32 %v499, 1.442695
    %v501 = vpow.pop %v500
    %v502 = vadd.f32 %v501, 1.0
    %v503 = vrcp.pop %v502
    %v504 = vmul.f32 1.0, %v503
    %v505 = vadd.f32 %v493, %v281
    %507 = vrot.lane.b32.xlu0 %v505, 64
    %v508 = vpop.permute.xlu0 %507
    %v510 = vmul.f32 %v504, %v508
    %512 = vrot.lane.b32.xlu0 %v510, 64
    %v513 = vpop.permute.xlu0 %512
    %v515 = vadd.f32 %v188, %v513
    %v516 = vtanh.pop %v515
    %v517 = vsub.f32 1.0, %v504
    %519 = vrot.lane.b32.xlu0 %v516, 96
    %v520 = vpop.permute.xlu0 %519
    %v522 = vmul.f32 %v517, %v520
    %v523 = vmul.f32 %v504, %v450
    %v524 = vadd.f32 %v522, %v523
    %v525 = vpack.c.bf16 %v524, %v524
    %527 = vrot.lane.b32.xlu0 %v525, 96
    %v528 = vpop.permute.xlu0 %527
    %v530 = vsel %vm229, %v528, 0
    %532 = vmatprep.subr.bf16.mxu0 0
    %533 = vmatpush1.bf16.msra.mxu0 %v225
    %534 = vmatprep.subr.bf16.mxu0 0
    %535 = vmatpush1.bf16.msra.mxu0 %v226
    %536 = vmatprep.subr.bf16.mxu0 0
    %537 = vmatpush1.bf16.msra.mxu0 0
    %538 = vmatprep.subr.bf16.mxu0 0
    %539 = vmatpush1.bf16.msra.mxu0 0
    %540 = vmatprep.subr.bf16.mxu0 0
    %541 = vmatpush1.bf16.msra.mxu0 0
    %542 = vmatprep.subr.bf16.mxu0 0
    %543 = vmatpush1.bf16.msra.mxu0 0
    %544 = vmatprep.subr.bf16.mxu0 0
    %545 = vmatpush1.bf16.msra.mxu0 0
    %546 = vmatprep.subr.bf16.mxu0 0
    %547 = vmatpush1.bf16.msra.mxu0 0
    %548 = vmatprep.subr.bf16.mxu0 0
    %549 = vmatpush1.bf16.msra.mxu0 0
    %550 = vmatprep.subr.bf16.mxu0 0
    %551 = vmatpush1.bf16.msra.mxu0 0
    %552 = vmatprep.subr.bf16.mxu0 0
    %553 = vmatpush1.bf16.msra.mxu0 0
    %554 = vmatprep.subr.bf16.mxu0 0
    %555 = vmatpush1.bf16.msra.mxu0 0
    %556 = vmatprep.subr.bf16.mxu0 0
    %557 = vmatpush1.bf16.msra.mxu0 0
    %558 = vmatprep.subr.bf16.mxu0 0
    %559 = vmatpush1.bf16.msra.mxu0 0
    %560 = vmatprep.subr.bf16.mxu0 0
    %561 = vmatpush1.bf16.msra.mxu0 0
    %562 = vmatprep.subr.bf16.mxu0 0
    %563 = vmatpush1.bf16.msra.mxu0 0
    %564 = vmatprep.mubr.bf16.mxu0 0
    %565 = vmatmul.mubr.bf16.gmra.mrb[0].mxu0 %v530
    %v566 = vpop.f32.mrb[0].mxu0
    %v567 = vadd.f32 0.0, %v566
    %v568 = vpop.f32.mrb[0].mxu0
    %v569 = vpop.f32.mrb[0].mxu0
    %v570 = vpop.f32.mrb[0].mxu0
    %571 = vdwg.mxu0
    %v572 = vadd.f32 %v193, %v567
    %v573 = vxor.u32 %v572, 2147483648
    %v574 = vmul.f32 %v573, 1.442695
    %v575 = vpow.pop %v574
    %v576 = vadd.f32 %v575, 1.0
    %v577 = vrcp.pop %v576
    %v578 = vmul.f32 1.0, %v577
    %v579 = vadd.f32 %v567, %v281
    %581 = vrot.lane.b32.xlu0 %v579, 64
    %v582 = vpop.permute.xlu0 %581
    %v584 = vmul.f32 %v578, %v582
    %586 = vrot.lane.b32.xlu0 %v584, 64
    %v587 = vpop.permute.xlu0 %586
    %v589 = vadd.f32 %v193, %v587
    %v590 = vtanh.pop %v589
    %v591 = vsub.f32 1.0, %v578
    %593 = vrot.lane.b32.xlu0 %v590, 96
    %v594 = vpop.permute.xlu0 %593
    %v596 = vmul.f32 %v591, %v594
    %v597 = vmul.f32 %v578, %v524
    %v598 = vadd.f32 %v596, %v597
    %v599 = vpack.c.bf16 %v598, %v598
    %601 = vrot.lane.b32.xlu0 %v599, 96
    %v602 = vpop.permute.xlu0 %601
    %v604 = vsel %vm229, %v602, 0
    %606 = vmatprep.subr.bf16.mxu0 0
    %607 = vmatpush1.bf16.msra.mxu0 %v225
    %608 = vmatprep.subr.bf16.mxu0 0
    %609 = vmatpush1.bf16.msra.mxu0 %v226
    %610 = vmatprep.subr.bf16.mxu0 0
    %611 = vmatpush1.bf16.msra.mxu0 0
    %612 = vmatprep.subr.bf16.mxu0 0
    %613 = vmatpush1.bf16.msra.mxu0 0
    %614 = vmatprep.subr.bf16.mxu0 0
    %615 = vmatpush1.bf16.msra.mxu0 0
    %616 = vmatprep.subr.bf16.mxu0 0
    %617 = vmatpush1.bf16.msra.mxu0 0
    %618 = vmatprep.subr.bf16.mxu0 0
    %619 = vmatpush1.bf16.msra.mxu0 0
    %620 = vmatprep.subr.bf16.mxu0 0
    %621 = vmatpush1.bf16.msra.mxu0 0
    %622 = vmatprep.subr.bf16.mxu0 0
    %623 = vmatpush1.bf16.msra.mxu0 0
    %624 = vmatprep.subr.bf16.mxu0 0
    %625 = vmatpush1.bf16.msra.mxu0 0
    %626 = vmatprep.subr.bf16.mxu0 0
    %627 = vmatpush1.bf16.msra.mxu0 0
    %628 = vmatprep.subr.bf16.mxu0 0
    %629 = vmatpush1.bf16.msra.mxu0 0
    %630 = vmatprep.subr.bf16.mxu0 0
    %631 = vmatpush1.bf16.msra.mxu0 0
    %632 = vmatprep.subr.bf16.mxu0 0
    %633 = vmatpush1.bf16.msra.mxu0 0
    %634 = vmatprep.subr.bf16.mxu0 0
    %635 = vmatpush1.bf16.msra.mxu0 0
    %636 = vmatprep.subr.bf16.mxu0 0
    %637 = vmatpush1.bf16.msra.mxu0 0
    %638 = vmatprep.mubr.bf16.mxu0 0
    %639 = vmatmul.mubr.bf16.gmra.mrb[0].mxu0 %v604
    %v640 = vpop.f32.mrb[0].mxu0
    %v641 = vadd.f32 0.0, %v640
    %v642 = vpop.f32.mrb[0].mxu0
    %v643 = vpop.f32.mrb[0].mxu0
    %v644 = vpop.f32.mrb[0].mxu0
    %645 = vdwg.mxu0
    %v646 = vadd.f32 %v196, %v641
    %v647 = vxor.u32 %v646, 2147483648
    %v648 = vmul.f32 %v647, 1.442695
    %v649 = vpow.pop %v648
    %v650 = vadd.f32 %v649, 1.0
    %v651 = vrcp.pop %v650
    %v652 = vmul.f32 1.0, %v651
    %v653 = vadd.f32 %v641, %v281
    %655 = vrot.lane.b32.xlu0 %v653, 64
    %v656 = vpop.permute.xlu0 %655
    %v658 = vmul.f32 %v652, %v656
    %660 = vrot.lane.b32.xlu0 %v658, 64
    %v661 = vpop.permute.xlu0 %660
    %v663 = vadd.f32 %v196, %v661
    %v664 = vtanh.pop %v663
    %v665 = vsub.f32 1.0, %v652
    %667 = vrot.lane.b32.xlu0 %v664, 96
    %v668 = vpop.permute.xlu0 %667
    %v670 = vmul.f32 %v665, %v668
    %v671 = vmul.f32 %v652, %v598
    %v672 = vadd.f32 %v670, %v671
    %v673 = vpack.c.bf16 %v672, %v672
    %675 = vrot.lane.b32.xlu0 %v673, 96
    %v676 = vpop.permute.xlu0 %675
    %v678 = vsel %vm229, %v676, 0
    %680 = vmatprep.subr.bf16.mxu0 0
    %681 = vmatpush1.bf16.msra.mxu0 %v225
    %682 = vmatprep.subr.bf16.mxu0 0
    %683 = vmatpush1.bf16.msra.mxu0 %v226
    %684 = vmatprep.subr.bf16.mxu0 0
    %685 = vmatpush1.bf16.msra.mxu0 0
    %686 = vmatprep.subr.bf16.mxu0 0
    %687 = vmatpush1.bf16.msra.mxu0 0
    %688 = vmatprep.subr.bf16.mxu0 0
    %689 = vmatpush1.bf16.msra.mxu0 0
    %690 = vmatprep.subr.bf16.mxu0 0
    %691 = vmatpush1.bf16.msra.mxu0 0
    %692 = vmatprep.subr.bf16.mxu0 0
    %693 = vmatpush1.bf16.msra.mxu0 0
    %694 = vmatprep.subr.bf16.mxu0 0
    %695 = vmatpush1.bf16.msra.mxu0 0
    %696 = vmatprep.subr.bf16.mxu0 0
    %697 = vmatpush1.bf16.msra.mxu0 0
    %698 = vmatprep.subr.bf16.mxu0 0
    %699 = vmatpush1.bf16.msra.mxu0 0
    %700 = vmatprep.subr.bf16.mxu0 0
    %701 = vmatpush1.bf16.msra.mxu0 0
    %702 = vmatprep.subr.bf16.mxu0 0
    %703 = vmatpush1.bf16.msra.mxu0 0
    %704 = vmatprep.subr.bf16.mxu0 0
    %705 = vmatpush1.bf16.msra.mxu0 0
    %706 = vmatprep.subr.bf16.mxu0 0
    %707 = vmatpush1.bf16.msra.mxu0 0
    %708 = vmatprep.subr.bf16.mxu0 0
    %709 = vmatpush1.bf16.msra.mxu0 0
    %710 = vmatprep.subr.bf16.mxu0 0
    %711 = vmatpush1.bf16.msra.mxu0 0
    %712 = vmatprep.mubr.bf16.mxu0 0
    %713 = vmatmul.mubr.bf16.gmra.mrb[0].mxu0 %v678
    %v714 = vpop.f32.mrb[0].mxu0
    %v715 = vadd.f32 0.0, %v714
    %v716 = vpop.f32.mrb[0].mxu0
    %v717 = vpop.f32.mrb[0].mxu0
    %v718 = vpop.f32.mrb[0].mxu0
    %719 = vdwg.mxu0
    %v720 = vadd.f32 %v201, %v715
    %v721 = vxor.u32 %v720, 2147483648
    %v722 = vmul.f32 %v721, 1.442695
    %v723 = vpow.pop %v722
    %v724 = vadd.f32 %v723, 1.0
    %v725 = vrcp.pop %v724
    %v726 = vmul.f32 1.0, %v725
    %v727 = vadd.f32 %v715, %v281
    %729 = vrot.lane.b32.xlu0 %v727, 64
    %v730 = vpop.permute.xlu0 %729
    %v732 = vmul.f32 %v726, %v730
    %734 = vrot.lane.b32.xlu0 %v732, 64
    %v735 = vpop.permute.xlu0 %734
    %v737 = vadd.f32 %v201, %v735
    %v738 = vtanh.pop %v737
    %v739 = vsub.f32 1.0, %v726
    %741 = vrot.lane.b32.xlu0 %v738, 96
    %v742 = vpop.permute.xlu0 %741
    %v744 = vmul.f32 %v739, %v742
    %v745 = vmul.f32 %v726, %v672
    %v746 = vadd.f32 %v744, %v745
    %v747 = vpack.c.bf16 %v746, %v746
    %749 = vrot.lane.b32.xlu0 %v747, 96
    %v750 = vpop.permute.xlu0 %749
    %v752 = vsel %vm229, %v750, 0
    %754 = vmatprep.subr.bf16.mxu0 0
    %755 = vmatpush1.bf16.msra.mxu0 %v225
    %756 = vmatprep.subr.bf16.mxu0 0
    %757 = vmatpush1.bf16.msra.mxu0 %v226
    %758 = vmatprep.subr.bf16.mxu0 0
    %759 = vmatpush1.bf16.msra.mxu0 0
    %760 = vmatprep.subr.bf16.mxu0 0
    %761 = vmatpush1.bf16.msra.mxu0 0
    %762 = vmatprep.subr.bf16.mxu0 0
    %763 = vmatpush1.bf16.msra.mxu0 0
    %764 = vmatprep.subr.bf16.mxu0 0
    %765 = vmatpush1.bf16.msra.mxu0 0
    %766 = vmatprep.subr.bf16.mxu0 0
    %767 = vmatpush1.bf16.msra.mxu0 0
    %768 = vmatprep.subr.bf16.mxu0 0
    %769 = vmatpush1.bf16.msra.mxu0 0
    %770 = vmatprep.subr.bf16.mxu0 0
    %771 = vmatpush1.bf16.msra.mxu0 0
    %772 = vmatprep.subr.bf16.mxu0 0
    %773 = vmatpush1.bf16.msra.mxu0 0
    %774 = vmatprep.subr.bf16.mxu0 0
    %775 = vmatpush1.bf16.msra.mxu0 0
    %776 = vmatprep.subr.bf16.mxu0 0
    %777 = vmatpush1.bf16.msra.mxu0 0
    %778 = vmatprep.subr.bf16.mxu0 0
    %779 = vmatpush1.bf16.msra.mxu0 0
    %780 = vmatprep.subr.bf16.mxu0 0
    %781 = vmatpush1.bf16.msra.mxu0 0
    %782 = vmatprep.subr.bf16.mxu0 0
    %783 = vmatpush1.bf16.msra.mxu0 0
    %784 = vmatprep.subr.bf16.mxu0 0
    %785 = vmatpush1.bf16.msra.mxu0 0
    %786 = vmatprep.mubr.bf16.mxu0 0
    %787 = vmatmul.mubr.bf16.gmra.mrb[0].mxu0 %v752
    %v788 = vpop.f32.mrb[0].mxu0
    %v789 = vadd.f32 0.0, %v788
    %v790 = vpop.f32.mrb[0].mxu0
    %v791 = vpop.f32.mrb[0].mxu0
    %v792 = vpop.f32.mrb[0].mxu0
    %793 = vdwg.mxu0
    %v794 = vadd.f32 %v204, %v789
    %v795 = vxor.u32 %v794, 2147483648
    %v796 = vmul.f32 %v795, 1.442695
    %v797 = vpow.pop %v796
    %v798 = vadd.f32 %v797, 1.0
    %v799 = vrcp.pop %v798
    %v800 = vmul.f32 1.0, %v799
    %v801 = vadd.f32 %v789, %v281
    %803 = vrot.lane.b32.xlu0 %v801, 64
    %v804 = vpop.permute.xlu0 %803
    %v806 = vmul.f32 %v800, %v804
    %808 = vrot.lane.b32.xlu0 %v806, 64
    %v809 = vpop.permute.xlu0 %808
    %v811 = vadd.f32 %v204, %v809
    %v812 = vtanh.pop %v811
    %v813 = vsub.f32 1.0, %v800
    %815 = vrot.lane.b32.xlu0 %v812, 96
    %v816 = vpop.permute.xlu0 %815
    %v818 = vmul.f32 %v813, %v816
    %v819 = vmul.f32 %v800, %v746
    %v820 = vadd.f32 %v818, %v819
    %v821 = vpack.c.bf16 %v820, %v820
    %v822 = vld [vmem:[%s5] sm:$0xf]
    %v823 = vld [vmem:[%s5 + $0x4] sm:$0xf]
    %v824 = vld [vmem:[%s5 + $0x8] sm:$0xf]
    %v825 = vld [vmem:[%s5 + $0xc] sm:$0xf]
    %v826 = vld [vmem:[%s6] sm:$0x1]
    %v828 = vlaneseq
    %v829 = vshrl.u32 %v828, 7
    %v830 = vsub.s32 0, %v829
    %v831 = vrot.slane %v826, %v830
    %834 = vrot.lane.b32.xlu0 %v821, 96
    %v835 = vpop.permute.xlu0 %834
    %v840 = vunpack.c.l.b16 %v822
    %v841 = vunpack.c.l.b16 %v823
    %v842 = vunpack.c.l.b16 %v824
    %v843 = vunpack.c.l.b16 %v825
    %v844 = vpack.c.b16 %v841, %v840
    %v845 = vpack.c.b16 %v843, %v842
    %v849 = vsel %vm229, %v835, 0
    %851 = vmatprep.subr.bf16.mxu0 0
    %852 = vmatpush1.bf16.msra.mxu0 %v844
    %853 = vmatprep.subr.bf16.mxu0 0
    %854 = vmatpush1.bf16.msra.mxu0 %v845
    %855 = vmatprep.subr.bf16.mxu0 0
    %856 = vmatpush1.bf16.msra.mxu0 0
    %857 = vmatprep.subr.bf16.mxu0 0
    %858 = vmatpush1.bf16.msra.mxu0 0
    %859 = vmatprep.subr.bf16.mxu0 0
    %860 = vmatpush1.bf16.msra.mxu0 0
    %861 = vmatprep.subr.bf16.mxu0 0
    %862 = vmatpush1.bf16.msra.mxu0 0
    %863 = vmatprep.subr.bf16.mxu0 0
    %864 = vmatpush1.bf16.msra.mxu0 0
    %865 = vmatprep.subr.bf16.mxu0 0
    %866 = vmatpush1.bf16.msra.mxu0 0
    %867 = vmatprep.subr.bf16.mxu0 0
    %868 = vmatpush1.bf16.msra.mxu0 0
    %869 = vmatprep.subr.bf16.mxu0 0
    %870 = vmatpush1.bf16.msra.mxu0 0
    %871 = vmatprep.subr.bf16.mxu0 0
    %872 = vmatpush1.bf16.msra.mxu0 0
    %873 = vmatprep.subr.bf16.mxu0 0
    %874 = vmatpush1.bf16.msra.mxu0 0
    %875 = vmatprep.subr.bf16.mxu0 0
    %876 = vmatpush1.bf16.msra.mxu0 0
    %877 = vmatprep.subr.bf16.mxu0 0
    %878 = vmatpush1.bf16.msra.mxu0 0
    %879 = vmatprep.subr.bf16.mxu0 0
    %880 = vmatpush1.bf16.msra.mxu0 0
    %881 = vmatprep.subr.bf16.mxu0 0
    %882 = vmatpush1.bf16.msra.mxu0 0
    %883 = vmatprep.mubr.bf16.mxu0 0
    %884 = vmatmul.mubr.bf16.gmra.mrb[0].mxu0 %v849
    %v885 = vpop.f32.mrb[0].mxu0
    %v886 = vadd.f32 %v831, %v885
    %v887 = vpop.f32.mrb[0].mxu0
    %v888 = vpop.f32.mrb[0].mxu0
    %v889 = vpop.f32.mrb[0].mxu0
    %890 = vdwg.mxu0
    %v891 = vxor.u32 %v886, 2147483648
    %v892 = vmul.f32 %v891, 1.442695
    %v893 = vpow.pop %v892
    %v894 = vadd.f32 %v893, 1.0
    %v895 = vrcp.pop %v894
    %v896 = vmul.f32 1.0, %v895
    %vm897 = vcmask 9216
    %898 = vst.msk [vmem:[#allocation2] sm:$0x3] %vm897, %v896
    // Predicated region
    $region30: #{tpu_custom_call.1} parent=1 // pred_check
      _
    $region31: #{tpu_custom_call.1} parent=1 // pred_check_branch
      %900 = sbr.rel (0) target = $region33
    $region32: #{tpu_custom_call.1} parent=1 // pred_region
      %s902 = ssub.s32 32, 32
      %903 = vsyncadd [#allocation3], %s902
      %s905 = sshll.u32 [#allocation2], 4
      %s906 = int_to_ptr.vmem [resolvable:$true] %s905
      %908 = dma.vmem_to_hbm [thread:$0]  %s906, 32, %s7, [#allocation3]
    $region33: #{tpu_custom_call.1} parent=1 // pred_fallthru
      _
    // Predicated region
    $region34: #{tpu_custom_call.1} parent=1 // pred_check
      _
    $region35: #{tpu_custom_call.1} parent=1 // pred_check_branch
      %910 = sbr.rel (0) target = $region37
    $region36: #{tpu_custom_call.1} parent=1 // pred_region
      %911 = dma.done [#allocation3], 32
    $region37: #{tpu_custom_call.1} parent=1 // pred_fallthru
      _
    %912 = vsyncpa [#allocation3], 1

</llo_original>
